<compile_context>
chip_gen: v7x
topology: tpu7x:2x2x1
jax: 0.10.0
libtpu: 0.0.40
codegen_flags: <defaults>
</compile_context>

<pallas_src>
import functools

import jax
import jax.numpy as jnp
from jax.experimental import pallas as pl
from jax.experimental.pallas import tpu as pltpu

_MIB = 1024 * 1024
_VMEM_LIMIT = 32 * _MIB      # scoped-VMEM request: explicit (v5e default is 16 MiB)
_FUSED_BUDGET = 26 * _MIB    # whole-network-resident threshold
_TILE_BUDGET = 20 * _MIB     # per-call budget for the tiled per-layer path


# ---------------------------------------------------------------------------
# helpers
# ---------------------------------------------------------------------------
def _round_up(x, m):
    return ((x + m - 1) // m) * m


def _pad2d(arr, rows, cols):
    r, c = arr.shape
    return jnp.pad(arr, ((0, rows - r), (0, cols - c)))


def _pick_tile(dim, candidates=(512, 256, 128)):
    for c in candidates:
        if dim % c == 0:
            return c
    return dim


def _pick_row_tile(n_pad, a_row_bytes, reserved_bytes, budget=_TILE_BUDGET):
    """Row-tile size for the aggregation kernel.

    Largest multiple-of-128 divisor of n_pad whose double-buffered A_hat row tile
    fits the remaining VMEM budget; prefer an even tile count so the 'parallel'
    grid axis splits evenly across v7x's 2 TensorCores.
    """
    avail = budget - reserved_bytes
    cands = [t for t in (1024, 768, 512, 384, 256, 128)
             if n_pad % t == 0 and 2 * t * a_row_bytes <= avail]
    if not cands:
        cands = [128] if n_pad % 128 == 0 else [n_pad]
    even = [t for t in cands if (n_pad // t) % 2 == 0]
    return even[0] if even else cands[0]


def _fused_vmem_estimate(n_pad, dims, compute_bytes=2):
    """Rough VMEM bytes for the fused whole-network kernel (inputs + live temps)."""
    est = 3 * n_pad * n_pad * compute_bytes            # A_hat: 2 buffers + live value
    est += 2 * n_pad * dims[0] * compute_bytes          # X buffers
    for ci, co in zip(dims[:-1], dims[1:]):
        est += 2 * (ci * co * compute_bytes + co * 4)   # W, b buffers
        est += n_pad * co * 4 + n_pad * max(ci, co) * 4  # live f32 intermediates
    est += 2 * n_pad * dims[-1] * 4                      # f32 output buffers
    return est


# ---------------------------------------------------------------------------
# Kernel 1: fused whole-network kernel (everything VMEM resident, grid=(1,))
# ---------------------------------------------------------------------------
def _fused_gcn_kernel(*refs, num_layers, agg_first, compute_dtype):
    a_ref, x_ref = refs[0], refs[1]
    o_ref = refs[-1]
    wb_refs = refs[2:-1]

    a = a_ref[...]
    h = x_ref[...]
    for layer in range(num_layers):
        w = wb_refs[2 * layer][...]
        b = wb_refs[2 * layer + 1][...]
        if agg_first[layer]:
            # (A_hat @ H) @ W  -- cheaper when ci <= co
            ah = jnp.dot(a, h, preferred_element_type=jnp.float32)
            out = jnp.dot(ah.astype(compute_dtype), w,
                          preferred_element_type=jnp.float32) + b
        else:
            # A_hat @ (H @ W)  -- cheaper when co < ci
            hw = jnp.dot(h, w, preferred_element_type=jnp.float32)
            out = jnp.dot(a, hw.astype(compute_dtype),
                          preferred_element_type=jnp.float32) + b
        if layer < num_layers - 1:
            h = jnp.maximum(out, 0.0).astype(compute_dtype)
        else:
            h = out
    o_ref[...] = h.astype(o_ref.dtype)


# ---------------------------------------------------------------------------
# Kernel 2: row-tiled full-K aggregation:  out_tile = (A_rowtile @ H) [@ W] + b
# ---------------------------------------------------------------------------
def _agg_layer_kernel(*refs, has_weight, apply_relu, compute_dtype):
    if has_weight:
        a_ref, h_ref, w_ref, b_ref, o_ref = refs
    else:
        a_ref, h_ref, b_ref, o_ref = refs
        w_ref = None

    out = jnp.dot(a_ref[...], h_ref[...], preferred_element_type=jnp.float32)
    if has_weight:
        out = jnp.dot(out.astype(compute_dtype), w_ref[...],
                      preferred_element_type=jnp.float32)
    out = out + b_ref[...]
    if apply_relu:
        out = jnp.maximum(out, 0.0)
    o_ref[...] = out.astype(o_ref.dtype)


def _aggregate_layer(a_p, h, w, bias, *, apply_relu, out_dtype, tm, compute_dtype):
    n_pad = a_p.shape[0]
    c = h.shape[1]
    co = w.shape[1] if w is not None else c

    operands = [a_p, h]
    in_specs = [
        pl.BlockSpec((tm, n_pad), lambda i: (i, 0)),   # A_hat row tile
        pl.BlockSpec((n_pad, c), lambda i: (0, 0)),    # H fully resident (DMA'd once)
    ]
    if w is not None:
        operands.append(w)
        in_specs.append(pl.BlockSpec(w.shape, lambda i: (0, 0)))
    operands.append(bias)
    in_specs.append(pl.BlockSpec(bias.shape, lambda i: (0, 0)))

    kernel = functools.partial(_agg_layer_kernel, has_weight=w is not None,
                               apply_relu=apply_relu, compute_dtype=compute_dtype)
    return pl.pallas_call(
        kernel,
        out_shape=jax.ShapeDtypeStruct((n_pad, co), out_dtype),
        grid=(n_pad // tm,),
        in_specs=in_specs,
        out_specs=pl.BlockSpec((tm, co), lambda i: (i, 0)),
        compiler_params=pltpu.CompilerParams(
            dimension_semantics=("parallel",),
            vmem_limit_bytes=_VMEM_LIMIT,
        ),
    )(*operands)


# ---------------------------------------------------------------------------
# Kernel 3: row-tiled full-K feature transform H = X @ W (no accumulator)
# ---------------------------------------------------------------------------
def _transform_kernel(x_ref, w_ref, o_ref):
    o_ref[...] = jnp.dot(x_ref[...], w_ref[...],
                         preferred_element_type=jnp.float32).astype(o_ref.dtype)


def _transform_layer(x, w, *, out_dtype, tm):
    n_pad, ci = x.shape
    co = w.shape[1]
    return pl.pallas_call(
        _transform_kernel,
        out_shape=jax.ShapeDtypeStruct((n_pad, co), out_dtype),
        grid=(n_pad // tm,),
        in_specs=[pl.BlockSpec((tm, ci), lambda i: (i, 0)),
                  pl.BlockSpec((ci, co), lambda i: (0, 0))],
        out_specs=pl.BlockSpec((tm, co), lambda i: (i, 0)),
        compiler_params=pltpu.CompilerParams(
            dimension_semantics=("parallel",),
            vmem_limit_bytes=_VMEM_LIMIT,
        ),
    )(x, w)


# ---------------------------------------------------------------------------
# Fallback: k-tiled matmul with f32 VMEM accumulator (only for graphs whose
# full-K slabs would not fit VMEM; not exercised by the tests below).
# ---------------------------------------------------------------------------
def _matmul_kernel(*refs, apply_bias, apply_relu):
    if apply_bias:
        x_ref, y_ref, b_ref, o_ref, acc_ref = refs
    else:
        x_ref, y_ref, o_ref, acc_ref = refs
        b_ref = None

    k = pl.program_id(2)

    @pl.when(k == 0)
    def _init():
        acc_ref[...] = jnp.zeros_like(acc_ref)

    acc_ref[...] += jnp.dot(x_ref[...], y_ref[...],
                            preferred_element_type=jnp.float32)

    @pl.when(k == pl.num_programs(2) - 1)
    def _finalize():
        out = acc_ref[...]
        if apply_bias:
            out = out + b_ref[...]
        if apply_relu:
            out = jnp.maximum(out, 0.0)
        o_ref[...] = out.astype(o_ref.dtype)


def _tiled_matmul(x, y, bias=None, *, apply_relu=False, out_dtype, tm, tn, tk):
    m, kdim = x.shape
    _, n = y.shape
    in_specs = [
        pl.BlockSpec((tm, tk), lambda i, j, k: (i, k)),
        pl.BlockSpec((tk, tn), lambda i, j, k: (k, j)),
    ]
    operands = [x, y]
    if bias is not None:
        in_specs.append(pl.BlockSpec((1, tn), lambda i, j, k: (0, j)))
        operands.append(bias)

    kernel = functools.partial(_matmul_kernel, apply_bias=bias is not None,
                               apply_relu=apply_relu)
    return pl.pallas_call(
        kernel,
        out_shape=jax.ShapeDtypeStruct((m, n), out_dtype),
        grid=(m // tm, n // tn, kdim // tk),
        in_specs=in_specs,
        out_specs=pl.BlockSpec((tm, tn), lambda i, j, k: (i, j)),
        scratch_shapes=[pltpu.VMEM((tm, tn), jnp.float32)],
        compiler_params=pltpu.CompilerParams(
            dimension_semantics=("parallel", "parallel", "arbitrary"),
            vmem_limit_bytes=_VMEM_LIMIT,
        ),
    )(*operands)


# ---------------------------------------------------------------------------
# Plain-JAX glue: dense symmetrically-normalized adjacency
# ---------------------------------------------------------------------------
def build_norm_adj(edge_index, num_nodes, out_dtype=jnp.float32):
    src = edge_index[0]
    dst = edge_index[1]
    # Off-diagonal edges accumulate weight 1; pre-existing self-loops are replaced
    # by exactly one weight-1 self-loop per node (add_remaining_self_loops semantics).
    w = jnp.where(src != dst, 1.0, 0.0).astype(jnp.float32)
    adj = jnp.zeros((num_nodes, num_nodes), jnp.float32)
    adj = adj.at[dst, src].add(w)
    adj = adj + jnp.eye(num_nodes, dtype=jnp.float32)
    deg = jnp.sum(adj, axis=1)
    d_inv_sqrt = jnp.where(deg > 0.0, jax.lax.rsqrt(deg), 0.0)
    # Normalization kept in f32; only the final matrix is cast to the compute dtype.
    return (d_inv_sqrt[:, None] * adj * d_inv_sqrt[None, :]).astype(out_dtype)


# ---------------------------------------------------------------------------
# GCN forward (mirrors the PyTorch module's forward)
# ---------------------------------------------------------------------------
def gcn_forward(params, x, edge_index, *, compute_dtype=jnp.bfloat16):
    n, c_in = x.shape
    num_layers = len(params)
    out_channels = params[-1][0].shape[1]

    # ---- pad nodes & channels to multiples of 128 (lane-dense blocks) -------
    n_pad = _round_up(n, 128)
    a_p = _pad2d(build_norm_adj(edge_index, n, out_dtype=compute_dtype), n_pad, n_pad)
    x_p = _pad2d(x.astype(compute_dtype), n_pad, _round_up(c_in, 128))

    padded_params = []
    for w, b in params:
        ci, co = w.shape
        w_p = _pad2d(w.astype(compute_dtype), _round_up(ci, 128), _round_up(co, 128))
        b_p = _pad2d(b.reshape(1, -1).astype(jnp.float32), 1, _round_up(co, 128))
        padded_params.append((w_p, b_p))

    dims = [x_p.shape[1]] + [w_p.shape[1] for w_p, _ in padded_params]
    c_out_pad = dims[-1]
    # Per-layer reassociation: aggregate first when ci_pad <= co_pad.
    agg_first = tuple(ci <= co for ci, co in zip(dims[:-1], dims[1:]))

    # ---- fused whole-network path (single pallas_call) ----------------------
    if n_pad <= 2048 and _fused_vmem_estimate(n_pad, dims) <= _FUSED_BUDGET:
        operands = [a_p, x_p]
        for w_p, b_p in padded_params:
            operands += [w_p, b_p]
        out_p = pl.pallas_call(
            functools.partial(_fused_gcn_kernel, num_layers=num_layers,
                              agg_first=agg_first, compute_dtype=compute_dtype),
            out_shape=jax.ShapeDtypeStruct((n_pad, c_out_pad), jnp.float32),
            grid=(1,),
            in_specs=[pl.BlockSpec(op.shape, lambda i: (0, 0)) for op in operands],
            out_specs=pl.BlockSpec((n_pad, c_out_pad), lambda i: (0, 0)),
            compiler_params=pltpu.CompilerParams(
                dimension_semantics=("arbitrary",),
                vmem_limit_bytes=_VMEM_LIMIT,
            ),
        )(*operands)
        return out_p[:n, :out_channels]

    # ---- tiled per-layer path ------------------------------------------------
    h = x_p
    a_row_bytes = n_pad * 2  # bf16 A_hat row
    for idx, (w_p, b_p) in enumerate(padded_params):
        is_last = idx == num_layers - 1
        ci_pad, co_pad = w_p.shape
        out_dtype = jnp.float32 if is_last else compute_dtype
        relu = not is_last

        h_cols = ci_pad if agg_first[idx] else co_pad    # width of resident full-K slab
        resident_bytes = (2 * n_pad * h_cols * 2          # H slab (double buffered)
                          + 2 * ci_pad * co_pad * 2       # W
                          + 2 * co_pad * 4)               # bias
        full_k_ok = resident_bytes + 2 * 128 * a_row_bytes <= _TILE_BUDGET

        if full_k_ok:
            tm = _pick_row_tile(n_pad, a_row_bytes, resident_bytes)
            if agg_first[idx]:
                # out = (A_hat @ H) @ W + b, one fused row-tiled call, A_hat read once.
                h = _aggregate_layer(a_p, h, w_p, b_p, apply_relu=relu,
                                     out_dtype=out_dtype, tm=tm,
                                     compute_dtype=compute_dtype)
            else:
                # Materialize H = X @ W once (no accumulator), then out = A_hat @ H + b.
                hw = _transform_layer(h, w_p, out_dtype=compute_dtype, tm=tm)
                h = _aggregate_layer(a_p, hw, None, b_p, apply_relu=relu,
                                     out_dtype=out_dtype, tm=tm,
                                     compute_dtype=compute_dtype)
        else:
            # Fallback for very large graphs: k-tiled accumulation.
            node_tile = _pick_tile(n_pad)
            hw = _tiled_matmul(h, w_p, apply_relu=False, out_dtype=compute_dtype,
                               tm=node_tile, tn=_pick_tile(co_pad, (512, 256, 128)),
                               tk=_pick_tile(ci_pad))
            h = _tiled_matmul(a_p, hw, b_p, apply_relu=relu, out_dtype=out_dtype,
                              tm=node_tile, tn=_pick_tile(co_pad, (512, 256, 128)),
                              tk=node_tile)
    return h[:n, :out_channels]


# ---------------------------------------------------------------------------
# Parameter init + pure-JAX f32 reference (for verification)
# ---------------------------------------------------------------------------
def init_gcn_params(key, num_features, hidden_channels, out_channels, num_layers=2):
    dims = [num_features] + [hidden_channels] * (num_layers - 1) + [out_channels]
    params = []
    for layer_idx in range(num_layers):
        key, wk = jax.random.split(key)
        c_in, c_out = dims[layer_idx], dims[layer_idx + 1]
        scale = 1.0 / jnp.sqrt(jnp.float32(c_in))
        w = jax.random.uniform(wk, (c_in, c_out), jnp.float32, -scale, scale)
        b = jnp.zeros((1, c_out), jnp.float32)
        params.append((w, b))
    return params


def gcn_reference(params, x, edge_index):
    a_hat = build_norm_adj(edge_index, x.shape[0])
    h = x
    for w, b in params[:-1]:
        h = jnp.maximum(a_hat @ (h @ w) + b, 0.0)
    w, b = params[-1]
    return a_hat @ (h @ w) + b


# ---------------------------------------------------------------------------
if __name__ == "__main__":
    key = jax.random.PRNGKey(0)

    def _check(out, ref, shape):
        assert out.shape == shape
        err = float(jnp.max(jnp.abs(out - ref)))
        tol = 0.05 * (float(jnp.max(jnp.abs(ref))) + 1.0)   # bf16 operands, f32 accum
        assert err < tol, (err, tol)

    # ---- toy size from the test (fused whole-network path) -------------------
    num_nodes, num_features, hidden, out_c, num_edges = 16, 8, 32, 4, 40
    key, xk, ek, pk = jax.random.split(key, 4)
    x = jax.random.normal(xk, (num_nodes, num_features), jnp.float32)
    edge_index = jax.random.randint(ek, (2, num_edges), 0, num_nodes, jnp.int32)
    params = init_gcn_params(pk, num_features, hidden, out_c, num_layers=2)

    out = jax.block_until_ready(gcn_forward(params, x, edge_index))
    ref = jax.block_until_ready(gcn_reference(params, x, edge_index))
    assert out.dtype == jnp.float32
    _check(out, ref, (num_nodes, out_c))

    # ---- medium graph: now also takes the fused single-call path -------------
    n2, f2, h2, o2, e2 = 1536, 96, 192, 10, 8192
    key, xk2, ek2, pk2 = jax.random.split(key, 4)
    x2 = jax.random.normal(xk2, (n2, f2), jnp.float32)
    edge_index2 = jax.random.randint(ek2, (2, e2), 0, n2, jnp.int32)
    params2 = init_gcn_params(pk2, f2, h2, o2, num_layers=2)

    out2 = jax.block_until_ready(gcn_forward(params2, x2, edge_index2))
    ref2 = jax.block_until_ready(gcn_reference(params2, x2, edge_index2))
    _check(out2, ref2, (n2, o2))

    # ---- larger graph: tiled per-layer path (agg-first and transform-first) --
    n3, f3, h3, o3, e3 = 2560, 64, 256, 16, 20000
    key, xk3, ek3, pk3 = jax.random.split(key, 4)
    x3 = jax.random.normal(xk3, (n3, f3), jnp.float32)
    edge_index3 = jax.random.randint(ek3, (2, e3), 0, n3, jnp.int32)
    params3 = init_gcn_params(pk3, f3, h3, o3, num_layers=3)

    out3 = jax.block_until_ready(gcn_forward(params3, x3, edge_index3))
    ref3 = jax.block_until_ready(gcn_reference(params3, x3, edge_index3))
    _check(out3, ref3, (n3, o3))

    print("KERNEL_OK")
</pallas_src>

<mosaic_0001>
module attributes {stable_mosaic.version = 11 : i64} {
  func.func @_fused_gcn_kernel(%arg0: i32, %arg1: memref<128x128xbf16, #tpu.memory_space<vmem>>, %arg2: memref<128x128xbf16, #tpu.memory_space<vmem>>, %arg3: memref<128x128xbf16, #tpu.memory_space<vmem>>, %arg4: memref<1x128xf32, #tpu.memory_space<vmem>>, %arg5: memref<128x128xbf16, #tpu.memory_space<vmem>>, %arg6: memref<1x128xf32, #tpu.memory_space<vmem>>, %arg7: memref<128x128xf32, #tpu.memory_space<vmem>>) attributes {dimension_semantics = [#tpu.dimension_semantics<arbitrary>], iteration_bounds = array<i64: 1>, scalar_prefetch = 0 : i64, scratch_operands = 0 : i64, tpu.core_type = #tpu.core_type<tc>, window_params = [{pipeline_mode = #tpu.pipeline_mode<synchronous>, transform_indices = @transform_0, window_bounds = array<i64: 128, 128>}, {pipeline_mode = #tpu.pipeline_mode<synchronous>, transform_indices = @transform_1, window_bounds = array<i64: 128, 128>}, {pipeline_mode = #tpu.pipeline_mode<synchronous>, transform_indices = @transform_2, window_bounds = array<i64: 128, 128>}, {pipeline_mode = #tpu.pipeline_mode<synchronous>, transform_indices = @transform_3, window_bounds = array<i64: 1, 128>}, {pipeline_mode = #tpu.pipeline_mode<synchronous>, transform_indices = @transform_4, window_bounds = array<i64: 128, 128>}, {pipeline_mode = #tpu.pipeline_mode<synchronous>, transform_indices = @transform_5, window_bounds = array<i64: 1, 128>}, {pipeline_mode = #tpu.pipeline_mode<synchronous>, transform_indices = @transform_6, window_bounds = array<i64: 128, 128>}]} {
    %c0 = arith.constant 0 : index
    %c0_0 = arith.constant 0 : index
    %0 = vector.load %arg1[%c0, %c0_0] : memref<128x128xbf16, #tpu.memory_space<vmem>>, vector<128x128xbf16>
    %c0_1 = arith.constant 0 : index
    %c0_2 = arith.constant 0 : index
    %1 = vector.load %arg2[%c0_1, %c0_2] : memref<128x128xbf16, #tpu.memory_space<vmem>>, vector<128x128xbf16>
    %c0_3 = arith.constant 0 : index
    %c0_4 = arith.constant 0 : index
    %2 = vector.load %arg3[%c0_3, %c0_4] : memref<128x128xbf16, #tpu.memory_space<vmem>>, vector<128x128xbf16>
    %c0_5 = arith.constant 0 : index
    %c0_6 = arith.constant 0 : index
    %3 = vector.load %arg4[%c0_5, %c0_6] : memref<1x128xf32, #tpu.memory_space<vmem>>, vector<1x128xf32>
    %cst = arith.constant dense<0.000000e+00> : vector<128x128xf32>
    %4 = tpu.matmul %0, %1, %cst {dimension_numbers = #tpu.dot_dimension_numbers<[1], [0], [0], [1], [0, 0, 1, 1], [], []>} : vector<128x128xbf16>, vector<128x128xbf16>, vector<128x128xf32> -> vector<128x128xf32>
    %5 = arith.truncf %4 : vector<128x128xf32> to vector<128x128xbf16>
    %cst_7 = arith.constant dense<0.000000e+00> : vector<128x128xf32>
    %6 = tpu.matmul %5, %2, %cst_7 {dimension_numbers = #tpu.dot_dimension_numbers<[1], [0], [0], [1], [0, 0, 1, 1], [], []>} : vector<128x128xbf16>, vector<128x128xbf16>, vector<128x128xf32> -> vector<128x128xf32>
    %7 = vector.broadcast %3 : vector<1x128xf32> to vector<128x128xf32>
    %8 = arith.addf %6, %7 : vector<128x128xf32>
    %cst_8 = arith.constant 0.000000e+00 : f32
    %9 = vector.broadcast %cst_8 : f32 to vector<128x128xf32>
    %10 = arith.maximumf %8, %9 : vector<128x128xf32>
    %11 = arith.truncf %10 : vector<128x128xf32> to vector<128x128xbf16>
    %c0_9 = arith.constant 0 : index
    %c0_10 = arith.constant 0 : index
    %12 = vector.load %arg5[%c0_9, %c0_10] : memref<128x128xbf16, #tpu.memory_space<vmem>>, vector<128x128xbf16>
    %c0_11 = arith.constant 0 : index
    %c0_12 = arith.constant 0 : index
    %13 = vector.load %arg6[%c0_11, %c0_12] : memref<1x128xf32, #tpu.memory_space<vmem>>, vector<1x128xf32>
    %cst_13 = arith.constant dense<0.000000e+00> : vector<128x128xf32>
    %14 = tpu.matmul %0, %11, %cst_13 {dimension_numbers = #tpu.dot_dimension_numbers<[1], [0], [0], [1], [0, 0, 1, 1], [], []>} : vector<128x128xbf16>, vector<128x128xbf16>, vector<128x128xf32> -> vector<128x128xf32>
    %15 = arith.truncf %14 : vector<128x128xf32> to vector<128x128xbf16>
    %cst_14 = arith.constant dense<0.000000e+00> : vector<128x128xf32>
    %16 = tpu.matmul %15, %12, %cst_14 {dimension_numbers = #tpu.dot_dimension_numbers<[1], [0], [0], [1], [0, 0, 1, 1], [], []>} : vector<128x128xbf16>, vector<128x128xbf16>, vector<128x128xf32> -> vector<128x128xf32>
    %17 = vector.broadcast %13 : vector<1x128xf32> to vector<128x128xf32>
    %18 = arith.addf %16, %17 : vector<128x128xf32>
    %c0_15 = arith.constant 0 : index
    %c0_16 = arith.constant 0 : index
    %19 = vector.load %arg7[%c0_15, %c0_16] : memref<128x128xf32, #tpu.memory_space<vmem>>, vector<128x128xf32>
    tpu.vector_store %arg7[%c0_15, %c0_16], %18 {strides = array<i32>} : memref<128x128xf32, #tpu.memory_space<vmem>>, vector<128x128xf32>,
    return
  }
  func.func @transform_0(%arg0: i32) -> (i32, i32) {
    %c0_i32 = arith.constant 0 : i32
    %c0_i32_0 = arith.constant 0 : i32
    %c0_i32_1 = arith.constant 0 : i32
    return %c0_i32, %c0_i32_0 : i32, i32
  }
  func.func @transform_1(%arg0: i32) -> (i32, i32) {
    %c0_i32 = arith.constant 0 : i32
    %c0_i32_0 = arith.constant 0 : i32
    %c0_i32_1 = arith.constant 0 : i32
    return %c0_i32, %c0_i32_0 : i32, i32
  }
  func.func @transform_2(%arg0: i32) -> (i32, i32) {
    %c0_i32 = arith.constant 0 : i32
    %c0_i32_0 = arith.constant 0 : i32
    %c0_i32_1 = arith.constant 0 : i32
    return %c0_i32, %c0_i32_0 : i32, i32
  }
  func.func @transform_3(%arg0: i32) -> (i32, i32) {
    %c0_i32 = arith.constant 0 : i32
    %c0_i32_0 = arith.constant 0 : i32
    %c0_i32_1 = arith.constant 0 : i32
    return %c0_i32, %c0_i32_0 : i32, i32
  }
  func.func @transform_4(%arg0: i32) -> (i32, i32) {
    %c0_i32 = arith.constant 0 : i32
    %c0_i32_0 = arith.constant 0 : i32
    %c0_i32_1 = arith.constant 0 : i32
    return %c0_i32, %c0_i32_0 : i32, i32
  }
  func.func @transform_5(%arg0: i32) -> (i32, i32) {
    %c0_i32 = arith.constant 0 : i32
    %c0_i32_0 = arith.constant 0 : i32
    %c0_i32_1 = arith.constant 0 : i32
    return %c0_i32, %c0_i32_0 : i32, i32
  }
  func.func @transform_6(%arg0: i32) -> (i32, i32) {
    %c0_i32 = arith.constant 0 : i32
    %c0_i32_0 = arith.constant 0 : i32
    %c0_i32_1 = arith.constant 0 : i32
    return %c0_i32, %c0_i32_0 : i32, i32
  }
}

</mosaic_0001>

<llo_original>
// kernel: tpu_custom_call.1
$region0: #{tpu_custom_call.1}
  #allocation0 [shape = 'u32[]', space=smem, size = 0x4, offset = 0x4, fixed_abs, tag = 'smem constant byte address 0x4 - core index']
  #allocation1 [shape = 'u32[144,128]{1,0:T(1,128)}', space=vmem, size = 0x12000, scoped, tag = 'internal scratch']
  %s0 = inlined_call_operand.hbm [shape: bf16[128,128], index: 0, kind: input, shape index: {}]
  %s1 = inlined_call_operand.hbm [shape: bf16[128,128], index: 1, kind: input, shape index: {}]
  %s2 = inlined_call_operand.hbm [shape: bf16[128,128], index: 2, kind: input, shape index: {}]
  %s3 = inlined_call_operand.vmem [shape: f32[1,128], index: 3, kind: input, shape index: {}]
  %s4 = inlined_call_operand.hbm [shape: bf16[128,128], index: 4, kind: input, shape index: {}]
  %s5 = inlined_call_operand.vmem [shape: f32[1,128], index: 5, kind: input, shape index: {}]
  %s6 = inlined_call_operand.hbm [shape: f32[128,128], index: 6, kind: output, shape index: {}]
  %s7 = sld [smem:[#allocation0]]
  $region50: #{tpu_custom_call.1} parent=0
    _
  %s9 = ssub.s32 1, %s7
  %s10 = scalar_select 0, %s9, %s7
  $region1: #{tpu_custom_call.1} parent=0
    #allocation2 [shape = 'u8[32768]{0}', space=vmem, size = 0x8000, scoped, tag = 'input window, operand 0, single buffered']
    #allocation3 [shape = 's32[1]{0}', space=sflag, size = 0x4, scoped, tag = 'scoped memory for tpu_custom_call.1']
    #allocation4 [shape = 's32[1]{0}', space=sflag, size = 0x4, scoped, tag = 'scoped memory for tpu_custom_call.1']
    #allocation5 [shape = 'u8[32768]{0}', space=vmem, size = 0x8000, scoped, tag = 'input window, operand 1, single buffered']
    #allocation6 [shape = 's32[1]{0}', space=sflag, size = 0x4, scoped, tag = 'scoped memory for tpu_custom_call.1']
    #allocation7 [shape = 'u8[32768]{0}', space=vmem, size = 0x8000, scoped, tag = 'input window, operand 2, single buffered']
    #allocation8 [shape = 'u8[32768]{0}', space=vmem, size = 0x8000, scoped, tag = 'input window, operand 4, single buffered']
    #allocation9 [shape = 's32[1]{0}', space=sflag, size = 0x4, scoped, tag = 'scoped memory for tpu_custom_call.1']
    #allocation10 [shape = 'u8[65536]{0}', space=vmem, size = 0x10000, scoped, tag = 'output window, operand 0, single buffered']
    %11 = vsyncpa [#allocation3], 0
    %12 = vsyncpa [#allocation6], 0
    %13 = vsyncpa [#allocation9], 0
    %14 = vsyncpa [#allocation4], 0
    // Predicated region
    $region2: #{tpu_custom_call.1} parent=1 // pred_check
      _
    $region3: #{tpu_custom_call.1} parent=1 // pred_check_branch
      %16 = sbr.rel (0) target = $region5
    $region4: #{tpu_custom_call.1} parent=1 // pred_region
      %s18 = ssub.s32 1024, 1024
      %19 = vsyncadd [#allocation3], %s18
      %s20 = sshll.u32 [#allocation2], 4
      %s21 = int_to_ptr.vmem [resolvable:$true] %s20
      %26 = dma.hbm_to_vmem [thread:$0]  %s0, 1024, %s21, [#allocation3], 64, 64, 4
    $region5: #{tpu_custom_call.1} parent=1 // pred_fallthru
      _
    // Predicated region
    $region6: #{tpu_custom_call.1} parent=1 // pred_check
      _
    $region7: #{tpu_custom_call.1} parent=1 // pred_check_branch
      %28 = sbr.rel (0) target = $region9
    $region8: #{tpu_custom_call.1} parent=1 // pred_region
      %s30 = ssub.s32 1024, 1024
      %31 = vsyncadd [#allocation6], %s30
      %s32 = sshll.u32 [#allocation5], 4
      %s33 = int_to_ptr.vmem [resolvable:$true] %s32
      %38 = dma.hbm_to_vmem [thread:$0]  %s1, 1024, %s33, [#allocation6], 64, 64, 4
    $region9: #{tpu_custom_call.1} parent=1 // pred_fallthru
      _
    // Predicated region
    $region10: #{tpu_custom_call.1} parent=1 // pred_check
      _
    $region11: #{tpu_custom_call.1} parent=1 // pred_check_branch
      %40 = sbr.rel (0) target = $region13
    $region12: #{tpu_custom_call.1} parent=1 // pred_region
      %s42 = ssub.s32 1024, 1024
      %43 = vsyncadd [#allocation6], %s42
      %s44 = sshll.u32 [#allocation7], 4
      %s45 = int_to_ptr.vmem [resolvable:$true] %s44
      %50 = dma.hbm_to_vmem [thread:$0]  %s2, 1024, %s45, [#allocation6], 64, 64, 4
    $region13: #{tpu_custom_call.1} parent=1 // pred_fallthru
      _
    // Predicated region
    $region14: #{tpu_custom_call.1} parent=1 // pred_check
      _
    $region15: #{tpu_custom_call.1} parent=1 // pred_check_branch
      %52 = sbr.rel (0) target = $region17
    $region16: #{tpu_custom_call.1} parent=1 // pred_region
      _
    $region17: #{tpu_custom_call.1} parent=1 // pred_fallthru
      _
    // Predicated region
    $region18: #{tpu_custom_call.1} parent=1 // pred_check
      _
    $region19: #{tpu_custom_call.1} parent=1 // pred_check_branch
      %54 = sbr.rel (0) target = $region21
    $region20: #{tpu_custom_call.1} parent=1 // pred_region
      %s56 = ssub.s32 1024, 1024
      %57 = vsyncadd [#allocation9], %s56
      %s58 = sshll.u32 [#allocation8], 4
      %s59 = int_to_ptr.vmem [resolvable:$true] %s58
      %64 = dma.hbm_to_vmem [thread:$0]  %s4, 1024, %s59, [#allocation9], 64, 64, 4
    $region21: #{tpu_custom_call.1} parent=1 // pred_fallthru
      _
    // Predicated region
    $region22: #{tpu_custom_call.1} parent=1 // pred_check
      _
    $region23: #{tpu_custom_call.1} parent=1 // pred_check_branch
      %66 = sbr.rel (0) target = $region25
    $region24: #{tpu_custom_call.1} parent=1 // pred_region
      _
    $region25: #{tpu_custom_call.1} parent=1 // pred_fallthru
      _
    // Predicated region
    $region26: #{tpu_custom_call.1} parent=1 // pred_check
      _
    $region27: #{tpu_custom_call.1} parent=1 // pred_check_branch
      %68 = sbr.rel (0) target = $region29
    $region28: #{tpu_custom_call.1} parent=1 // pred_region
      %69 = dma.done [#allocation3], 1024
    $region29: #{tpu_custom_call.1} parent=1 // pred_fallthru
      _
    // Predicated region
    $region30: #{tpu_custom_call.1} parent=1 // pred_check
      _
    $region31: #{tpu_custom_call.1} parent=1 // pred_check_branch
      %71 = sbr.rel (0) target = $region33
    $region32: #{tpu_custom_call.1} parent=1 // pred_region
      %72 = dma.done [#allocation6], 1024
    $region33: #{tpu_custom_call.1} parent=1 // pred_fallthru
      _
    // Predicated region
    $region34: #{tpu_custom_call.1} parent=1 // pred_check
      _
    $region35: #{tpu_custom_call.1} parent=1 // pred_check_branch
      %74 = sbr.rel (0) target = $region37
    $region36: #{tpu_custom_call.1} parent=1 // pred_region
      %75 = dma.done [#allocation6], 1024
    $region37: #{tpu_custom_call.1} parent=1 // pred_fallthru
      _
    // Predicated region
    $region38: #{tpu_custom_call.1} parent=1 // pred_check
      _
    $region39: #{tpu_custom_call.1} parent=1 // pred_check_branch
      %77 = sbr.rel (0) target = $region41
    $region40: #{tpu_custom_call.1} parent=1 // pred_region
      %78 = dma.done [#allocation9], 1024
    $region41: #{tpu_custom_call.1} parent=1 // pred_fallthru
      _
    %v80 = vld [vmem:[#allocation2] sm:$0xf]
    %v81 = vld [vmem:[#allocation2 + $0x4] sm:$0xf]
    %v82 = vld [vmem:[#allocation2 + $0x8] sm:$0xf]
    %v83 = vld [vmem:[#allocation2 + $0xc] sm:$0xf]
    %v84 = vld [vmem:[#allocation2 + $0x10] sm:$0xf]
    %v85 = vld [vmem:[#allocation2 + $0x14] sm:$0xf]
    %v86 = vld [vmem:[#allocation2 + $0x18] sm:$0xf]
    %v87 = vld [vmem:[#allocation2 + $0x1c] sm:$0xf]
    %v88 = vld [vmem:[#allocation2 + $0x20] sm:$0xf]
    %v89 = vld [vmem:[#allocation2 + $0x24] sm:$0xf]
    %v90 = vld [vmem:[#allocation2 + $0x28] sm:$0xf]
    %v91 = vld [vmem:[#allocation2 + $0x2c] sm:$0xf]
    %v92 = vld [vmem:[#allocation2 + $0x30] sm:$0xf]
    %v93 = vld [vmem:[#allocation2 + $0x34] sm:$0xf]
    %v94 = vld [vmem:[#allocation2 + $0x38] sm:$0xf]
    %v95 = vld [vmem:[#allocation2 + $0x3c] sm:$0xf]
    %v96 = vld [vmem:[#allocation5] sm:$0xf]
    %v97 = vld [vmem:[#allocation5 + $0x4] sm:$0xf]
    %v98 = vld [vmem:[#allocation5 + $0x8] sm:$0xf]
    %v99 = vld [vmem:[#allocation5 + $0xc] sm:$0xf]
    %v100 = vld [vmem:[#allocation5 + $0x10] sm:$0xf]
    %v101 = vld [vmem:[#allocation5 + $0x14] sm:$0xf]
    %v102 = vld [vmem:[#allocation5 + $0x18] sm:$0xf]
    %v103 = vld [vmem:[#allocation5 + $0x1c] sm:$0xf]
    %v104 = vld [vmem:[#allocation5 + $0x20] sm:$0xf]
    %v105 = vld [vmem:[#allocation5 + $0x24] sm:$0xf]
    %v106 = vld [vmem:[#allocation5 + $0x28] sm:$0xf]
    %v107 = vld [vmem:[#allocation5 + $0x2c] sm:$0xf]
    %v108 = vld [vmem:[#allocation5 + $0x30] sm:$0xf]
    %v109 = vld [vmem:[#allocation5 + $0x34] sm:$0xf]
    %v110 = vld [vmem:[#allocation5 + $0x38] sm:$0xf]
    %v111 = vld [vmem:[#allocation5 + $0x3c] sm:$0xf]
    %v112 = vld [vmem:[#allocation7] sm:$0xf]
    %v113 = vld [vmem:[#allocation7 + $0x4] sm:$0xf]
    %v114 = vld [vmem:[#allocation7 + $0x8] sm:$0xf]
    %v115 = vld [vmem:[#allocation7 + $0xc] sm:$0xf]
    %v116 = vld [vmem:[#allocation7 + $0x10] sm:$0xf]
    %v117 = vld [vmem:[#allocation7 + $0x14] sm:$0xf]
    %v118 = vld [vmem:[#allocation7 + $0x18] sm:$0xf]
    %v119 = vld [vmem:[#allocation7 + $0x1c] sm:$0xf]
    %v120 = vld [vmem:[#allocation7 + $0x20] sm:$0xf]
    %v121 = vld [vmem:[#allocation7 + $0x24] sm:$0xf]
    %v122 = vld [vmem:[#allocation7 + $0x28] sm:$0xf]
    %v123 = vld [vmem:[#allocation7 + $0x2c] sm:$0xf]
    %v124 = vld [vmem:[#allocation7 + $0x30] sm:$0xf]
    %v125 = vld [vmem:[#allocation7 + $0x34] sm:$0xf]
    %v126 = vld [vmem:[#allocation7 + $0x38] sm:$0xf]
    %v127 = vld [vmem:[#allocation7 + $0x3c] sm:$0xf]
    %v128 = vld [vmem:[%s3] sm:$0x1]
    %v145 = vunpack.c.l.b16 %v80
    %v146 = vunpack.c.l.b16 %v81
    %v147 = vunpack.c.l.b16 %v82
    %v148 = vunpack.c.l.b16 %v83
    %v149 = vunpack.c.l.b16 %v84
    %v150 = vunpack.c.l.b16 %v85
    %v151 = vunpack.c.l.b16 %v86
    %v152 = vunpack.c.l.b16 %v87
    %v153 = vunpack.c.l.b16 %v88
    %v154 = vunpack.c.l.b16 %v89
    %v155 = vunpack.c.l.b16 %v90
    %v156 = vunpack.c.l.b16 %v91
    %v157 = vunpack.c.l.b16 %v92
    %v158 = vunpack.c.l.b16 %v93
    %v159 = vunpack.c.l.b16 %v94
    %v160 = vunpack.c.l.b16 %v95
    %v161 = vpack.c.b16 %v146, %v145
    %v162 = vpack.c.b16 %v148, %v147
    %v163 = vpack.c.b16 %v150, %v149
    %v164 = vpack.c.b16 %v152, %v151
    %v165 = vpack.c.b16 %v154, %v153
    %v166 = vpack.c.b16 %v156, %v155
    %v167 = vpack.c.b16 %v158, %v157
    %v168 = vpack.c.b16 %v160, %v159
    %v193 = vunpack.c.l.b16 %v96
    %v194 = vunpack.c.l.b16 %v97
    %v195 = vunpack.c.l.b16 %v98
    %v196 = vunpack.c.l.b16 %v99
    %v197 = vunpack.c.l.b16 %v100
    %v198 = vunpack.c.l.b16 %v101
    %v199 = vunpack.c.l.b16 %v102
    %v200 = vunpack.c.l.b16 %v103
    %v201 = vunpack.c.l.b16 %v104
    %v202 = vunpack.c.l.b16 %v105
    %v203 = vunpack.c.l.b16 %v106
    %v204 = vunpack.c.l.b16 %v107
    %v205 = vunpack.c.l.b16 %v108
    %v206 = vunpack.c.l.b16 %v109
    %v207 = vunpack.c.l.b16 %v110
    %v208 = vunpack.c.l.b16 %v111
    %v209 = vpack.c.b16 %v194, %v193
    %v210 = vpack.c.b16 %v196, %v195
    %v211 = vpack.c.b16 %v198, %v197
    %v212 = vpack.c.b16 %v200, %v199
    %v213 = vpack.c.b16 %v202, %v201
    %v214 = vpack.c.b16 %v204, %v203
    %v215 = vpack.c.b16 %v206, %v205
    %v216 = vpack.c.b16 %v208, %v207
    %225 = vmatprep.subr.bf16.mxu0 0
    %226 = vmatpush1.bf16.msra.mxu0 %v209
    %227 = vmatprep.subr.bf16.mxu0 0
    %228 = vmatpush1.bf16.msra.mxu0 %v210
    %229 = vmatprep.subr.bf16.mxu0 0
    %230 = vmatpush1.bf16.msra.mxu0 %v211
    %231 = vmatprep.subr.bf16.mxu0 0
    %232 = vmatpush1.bf16.msra.mxu0 %v212
    %233 = vmatprep.subr.bf16.mxu0 0
    %234 = vmatpush1.bf16.msra.mxu0 %v213
    %235 = vmatprep.subr.bf16.mxu0 0
    %236 = vmatpush1.bf16.msra.mxu0 %v214
    %237 = vmatprep.subr.bf16.mxu0 0
    %238 = vmatpush1.bf16.msra.mxu0 %v215
    %239 = vmatprep.subr.bf16.mxu0 0
    %240 = vmatpush1.bf16.msra.mxu0 %v216
    %241 = vmatprep.subr.bf16.mxu0 0
    %242 = vmatpush1.bf16.msra.mxu0 0
    %243 = vmatprep.subr.bf16.mxu0 0
    %244 = vmatpush1.bf16.msra.mxu0 0
    %245 = vmatprep.subr.bf16.mxu0 0
    %246 = vmatpush1.bf16.msra.mxu0 0
    %247 = vmatprep.subr.bf16.mxu0 0
    %248 = vmatpush1.bf16.msra.mxu0 0
    %249 = vmatprep.subr.bf16.mxu0 0
    %250 = vmatpush1.bf16.msra.mxu0 0
    %251 = vmatprep.subr.bf16.mxu0 0
    %252 = vmatpush1.bf16.msra.mxu0 0
    %253 = vmatprep.subr.bf16.mxu0 0
    %254 = vmatpush1.bf16.msra.mxu0 0
    %255 = vmatprep.subr.bf16.mxu0 0
    %256 = vmatpush1.bf16.msra.mxu0 0
    %257 = vmatprep.mubr.bf16.mxu0 0
    %258 = vmatmul.mubr.bf16.gmra.mrb[0].mxu0 %v161
    %v259 = vpop.f32.mrb[0].mxu0
    %v260 = vadd.f32 0.0, %v259
    %v261 = vpop.f32.mrb[0].mxu0
    %v262 = vpop.f32.mrb[0].mxu0
    %v263 = vadd.f32 0.0, %v262
    %v264 = vpop.f32.mrb[0].mxu0
    %265 = vmatprep.mubr.bf16.mxu0 0
    %266 = vmatmul.mubr.bf16.gmra.mrb[0].mxu0 %v162
    %v267 = vpop.f32.mrb[0].mxu0
    %v268 = vadd.f32 0.0, %v267
    %v269 = vpop.f32.mrb[0].mxu0
    %v270 = vpop.f32.mrb[0].mxu0
    %v271 = vadd.f32 0.0, %v270
    %v272 = vpop.f32.mrb[0].mxu0
    %273 = vmatprep.mubr.bf16.mxu0 0
    %274 = vmatmul.mubr.bf16.gmra.mrb[0].mxu0 %v163
    %v275 = vpop.f32.mrb[0].mxu0
    %v276 = vadd.f32 0.0, %v275
    %v277 = vpop.f32.mrb[0].mxu0
    %v278 = vpop.f32.mrb[0].mxu0
    %v279 = vadd.f32 0.0, %v278
    %v280 = vpop.f32.mrb[0].mxu0
    %281 = vmatprep.mubr.bf16.mxu0 0
    %282 = vmatmul.mubr.bf16.gmra.mrb[0].mxu0 %v164
    %v283 = vpop.f32.mrb[0].mxu0
    %v284 = vadd.f32 0.0, %v283
    %v285 = vpop.f32.mrb[0].mxu0
    %v286 = vpop.f32.mrb[0].mxu0
    %v287 = vadd.f32 0.0, %v286
    %v288 = vpop.f32.mrb[0].mxu0
    %289 = vmatprep.mubr.bf16.mxu0 0
    %290 = vmatmul.mubr.bf16.gmra.mrb[0].mxu0 %v165
    %v291 = vpop.f32.mrb[0].mxu0
    %v292 = vadd.f32 0.0, %v291
    %v293 = vpop.f32.mrb[0].mxu0
    %v294 = vpop.f32.mrb[0].mxu0
    %v295 = vadd.f32 0.0, %v294
    %v296 = vpop.f32.mrb[0].mxu0
    %297 = vmatprep.mubr.bf16.mxu0 0
    %298 = vmatmul.mubr.bf16.gmra.mrb[0].mxu0 %v166
    %v299 = vpop.f32.mrb[0].mxu0
    %v300 = vadd.f32 0.0, %v299
    %v301 = vpop.f32.mrb[0].mxu0
    %v302 = vpop.f32.mrb[0].mxu0
    %v303 = vadd.f32 0.0, %v302
    %v304 = vpop.f32.mrb[0].mxu0
    %305 = vmatprep.mubr.bf16.mxu0 0
    %306 = vmatmul.mubr.bf16.gmra.mrb[0].mxu0 %v167
    %v307 = vpop.f32.mrb[0].mxu0
    %v308 = vadd.f32 0.0, %v307
    %v309 = vpop.f32.mrb[0].mxu0
    %v310 = vpop.f32.mrb[0].mxu0
    %v311 = vadd.f32 0.0, %v310
    %v312 = vpop.f32.mrb[0].mxu0
    %313 = vmatprep.mubr.bf16.mxu0 0
    %314 = vmatmul.mubr.bf16.gmra.mrb[0].mxu0 %v168
    %v315 = vpop.f32.mrb[0].mxu0
    %v316 = vadd.f32 0.0, %v315
    %v317 = vpop.f32.mrb[0].mxu0
    %v318 = vpop.f32.mrb[0].mxu0
    %v319 = vadd.f32 0.0, %v318
    %v320 = vpop.f32.mrb[0].mxu0
    %321 = vdwg.mxu0
    %v322 = vpack.c.bf16 %v263, %v260
    %v323 = vpack.c.bf16 %v271, %v268
    %v324 = vpack.c.bf16 %v279, %v276
    %v325 = vpack.c.bf16 %v287, %v284
    %v326 = vpack.c.bf16 %v295, %v292
    %v327 = vpack.c.bf16 %v303, %v300
    %v328 = vpack.c.bf16 %v311, %v308
    %v329 = vpack.c.bf16 %v319, %v316
    %v331 = vlaneseq
    %v332 = vshrl.u32 %v331, 7
    %v333 = vsub.s32 0, %v332
    %v334 = vrot.slane %v128, %v333
    %v352 = vunpack.c.l.b16 %v112
    %v353 = vunpack.c.l.b16 %v113
    %v354 = vunpack.c.l.b16 %v114
    %v355 = vunpack.c.l.b16 %v115
    %v356 = vunpack.c.l.b16 %v116
    %v357 = vunpack.c.l.b16 %v117
    %v358 = vunpack.c.l.b16 %v118
    %v359 = vunpack.c.l.b16 %v119
    %v360 = vunpack.c.l.b16 %v120
    %v361 = vunpack.c.l.b16 %v121
    %v362 = vunpack.c.l.b16 %v122
    %v363 = vunpack.c.l.b16 %v123
    %v364 = vunpack.c.l.b16 %v124
    %v365 = vunpack.c.l.b16 %v125
    %v366 = vunpack.c.l.b16 %v126
    %v367 = vunpack.c.l.b16 %v127
    %v368 = vpack.c.b16 %v353, %v352
    %v369 = vpack.c.b16 %v355, %v354
    %v370 = vpack.c.b16 %v357, %v356
    %v371 = vpack.c.b16 %v359, %v358
    %v372 = vpack.c.b16 %v361, %v360
    %v373 = vpack.c.b16 %v363, %v362
    %v374 = vpack.c.b16 %v365, %v364
    %v375 = vpack.c.b16 %v367, %v366
    %384 = vmatprep.subr.bf16.mxu0 0
    %385 = vmatpush1.bf16.msra.mxu0 %v368
    %386 = vmatprep.subr.bf16.mxu0 0
    %387 = vmatpush1.bf16.msra.mxu0 %v369
    %388 = vmatprep.subr.bf16.mxu0 0
    %389 = vmatpush1.bf16.msra.mxu0 %v370
    %390 = vmatprep.subr.bf16.mxu0 0
    %391 = vmatpush1.bf16.msra.mxu0 %v371
    %392 = vmatprep.subr.bf16.mxu0 0
    %393 = vmatpush1.bf16.msra.mxu0 %v372
    %394 = vmatprep.subr.bf16.mxu0 0
    %395 = vmatpush1.bf16.msra.mxu0 %v373
    %396 = vmatprep.subr.bf16.mxu0 0
    %397 = vmatpush1.bf16.msra.mxu0 %v374
    %398 = vmatprep.subr.bf16.mxu0 0
    %399 = vmatpush1.bf16.msra.mxu0 %v375
    %400 = vmatprep.subr.bf16.mxu0 0
    %401 = vmatpush1.bf16.msra.mxu0 0
    %402 = vmatprep.subr.bf16.mxu0 0
    %403 = vmatpush1.bf16.msra.mxu0 0
    %404 = vmatprep.subr.bf16.mxu0 0
    %405 = vmatpush1.bf16.msra.mxu0 0
    %406 = vmatprep.subr.bf16.mxu0 0
    %407 = vmatpush1.bf16.msra.mxu0 0
    %408 = vmatprep.subr.bf16.mxu0 0
    %409 = vmatpush1.bf16.msra.mxu0 0
    %410 = vmatprep.subr.bf16.mxu0 0
    %411 = vmatpush1.bf16.msra.mxu0 0
    %412 = vmatprep.subr.bf16.mxu0 0
    %413 = vmatpush1.bf16.msra.mxu0 0
    %414 = vmatprep.subr.bf16.mxu0 0
    %415 = vmatpush1.bf16.msra.mxu0 0
    %416 = vmatprep.mubr.bf16.mxu0 0
    %417 = vmatmul.mubr.bf16.gmra.mrb[0].mxu0 %v322
    %v418 = vpop.f32.mrb[0].mxu0
    %v419 = vadd.f32 %v334, %v418
    %v420 = vpop.f32.mrb[0].mxu0
    %v421 = vpop.f32.mrb[0].mxu0
    %v422 = vadd.f32 %v334, %v421
    %v423 = vpop.f32.mrb[0].mxu0
    %424 = vmatprep.mubr.bf16.mxu0 0
    %425 = vmatmul.mubr.bf16.gmra.mrb[0].mxu0 %v323
    %v426 = vpop.f32.mrb[0].mxu0
    %v427 = vadd.f32 %v334, %v426
    %v428 = vpop.f32.mrb[0].mxu0
    %v429 = vpop.f32.mrb[0].mxu0
    %v430 = vadd.f32 %v334, %v429
    %v431 = vpop.f32.mrb[0].mxu0
    %432 = vmatprep.mubr.bf16.mxu0 0
    %433 = vmatmul.mubr.bf16.gmra.mrb[0].mxu0 %v324
    %v434 = vpop.f32.mrb[0].mxu0
    %v435 = vadd.f32 %v334, %v434
    %v436 = vpop.f32.mrb[0].mxu0
    %v437 = vpop.f32.mrb[0].mxu0
    %v438 = vadd.f32 %v334, %v437
    %v439 = vpop.f32.mrb[0].mxu0
    %440 = vmatprep.mubr.bf16.mxu0 0
    %441 = vmatmul.mubr.bf16.gmra.mrb[0].mxu0 %v325
    %v442 = vpop.f32.mrb[0].mxu0
    %v443 = vadd.f32 %v334, %v442
    %v444 = vpop.f32.mrb[0].mxu0
    %v445 = vpop.f32.mrb[0].mxu0
    %v446 = vadd.f32 %v334, %v445
    %v447 = vpop.f32.mrb[0].mxu0
    %448 = vmatprep.mubr.bf16.mxu0 0
    %449 = vmatmul.mubr.bf16.gmra.mrb[0].mxu0 %v326
    %v450 = vpop.f32.mrb[0].mxu0
    %v451 = vadd.f32 %v334, %v450
    %v452 = vpop.f32.mrb[0].mxu0
    %v453 = vpop.f32.mrb[0].mxu0
    %v454 = vadd.f32 %v334, %v453
    %v455 = vpop.f32.mrb[0].mxu0
    %456 = vmatprep.mubr.bf16.mxu0 0
    %457 = vmatmul.mubr.bf16.gmra.mrb[0].mxu0 %v327
    %v458 = vpop.f32.mrb[0].mxu0
    %v459 = vadd.f32 %v334, %v458
    %v460 = vpop.f32.mrb[0].mxu0
    %v461 = vpop.f32.mrb[0].mxu0
    %v462 = vadd.f32 %v334, %v461
    %v463 = vpop.f32.mrb[0].mxu0
    %464 = vmatprep.mubr.bf16.mxu0 0
    %465 = vmatmul.mubr.bf16.gmra.mrb[0].mxu0 %v328
    %v466 = vpop.f32.mrb[0].mxu0
    %v467 = vadd.f32 %v334, %v466
    %v468 = vpop.f32.mrb[0].mxu0
    %v469 = vpop.f32.mrb[0].mxu0
    %v470 = vadd.f32 %v334, %v469
    %v471 = vpop.f32.mrb[0].mxu0
    %472 = vmatprep.mubr.bf16.mxu0 0
    %473 = vmatmul.mubr.bf16.gmra.mrb[0].mxu0 %v329
    %v474 = vpop.f32.mrb[0].mxu0
    %v475 = vadd.f32 %v334, %v474
    %v476 = vpop.f32.mrb[0].mxu0
    %v477 = vpop.f32.mrb[0].mxu0
    %v478 = vadd.f32 %v334, %v477
    %v479 = vpop.f32.mrb[0].mxu0
    %480 = vdwg.mxu0
    %v481 = vmax.f32 %v419, 0.0
    %v482 = vmax.f32 %v422, 0.0
    %v483 = vmax.f32 %v427, 0.0
    %v484 = vmax.f32 %v430, 0.0
    %v485 = vmax.f32 %v435, 0.0
    %v486 = vmax.f32 %v438, 0.0
    %v487 = vmax.f32 %v443, 0.0
    %v488 = vmax.f32 %v446, 0.0
    %v489 = vmax.f32 %v451, 0.0
    %v490 = vmax.f32 %v454, 0.0
    %v491 = vmax.f32 %v459, 0.0
    %v492 = vmax.f32 %v462, 0.0
    %v493 = vmax.f32 %v467, 0.0
    %v494 = vmax.f32 %v470, 0.0
    %v495 = vmax.f32 %v475, 0.0
    %v496 = vmax.f32 %v478, 0.0
    %v497 = vpack.c.bf16 %v482, %v481
    %v498 = vpack.c.bf16 %v484, %v483
    %v499 = vpack.c.bf16 %v486, %v485
    %v500 = vpack.c.bf16 %v488, %v487
    %v501 = vpack.c.bf16 %v490, %v489
    %v502 = vpack.c.bf16 %v492, %v491
    %v503 = vpack.c.bf16 %v494, %v493
    %v504 = vpack.c.bf16 %v496, %v495
    %v505 = vld [vmem:[#allocation8] sm:$0xf]
    %v506 = vld [vmem:[#allocation8 + $0x4] sm:$0xf]
    %v507 = vld [vmem:[#allocation8 + $0x8] sm:$0xf]
    %v508 = vld [vmem:[#allocation8 + $0xc] sm:$0xf]
    %v509 = vld [vmem:[#allocation8 + $0x10] sm:$0xf]
    %v510 = vld [vmem:[#allocation8 + $0x14] sm:$0xf]
    %v511 = vld [vmem:[#allocation8 + $0x18] sm:$0xf]
    %v512 = vld [vmem:[#allocation8 + $0x1c] sm:$0xf]
    %v513 = vld [vmem:[#allocation8 + $0x20] sm:$0xf]
    %v514 = vld [vmem:[#allocation8 + $0x24] sm:$0xf]
    %v515 = vld [vmem:[#allocation8 + $0x28] sm:$0xf]
    %v516 = vld [vmem:[#allocation8 + $0x2c] sm:$0xf]
    %v517 = vld [vmem:[#allocation8 + $0x30] sm:$0xf]
    %v518 = vld [vmem:[#allocation8 + $0x34] sm:$0xf]
    %v519 = vld [vmem:[#allocation8 + $0x38] sm:$0xf]
    %v520 = vld [vmem:[#allocation8 + $0x3c] sm:$0xf]
    %v521 = vld [vmem:[%s5] sm:$0x1]
    %522 = vmatprep.subr.bf16.mxu0 0
    %523 = vmatpush1.bf16.msra.mxu0 %v497
    %524 = vmatprep.subr.bf16.mxu0 0
    %525 = vmatpush1.bf16.msra.mxu0 %v498
    %526 = vmatprep.subr.bf16.mxu0 0
    %527 = vmatpush1.bf16.msra.mxu0 %v499
    %528 = vmatprep.subr.bf16.mxu0 0
    %529 = vmatpush1.bf16.msra.mxu0 %v500
    %530 = vmatprep.subr.bf16.mxu0 0
    %531 = vmatpush1.bf16.msra.mxu0 %v501
    %532 = vmatprep.subr.bf16.mxu0 0
    %533 = vmatpush1.bf16.msra.mxu0 %v502
    %534 = vmatprep.subr.bf16.mxu0 0
    %535 = vmatpush1.bf16.msra.mxu0 %v503
    %536 = vmatprep.subr.bf16.mxu0 0
    %537 = vmatpush1.bf16.msra.mxu0 %v504
    %538 = vmatprep.subr.bf16.mxu0 0
    %539 = vmatpush1.bf16.msra.mxu0 0
    %540 = vmatprep.subr.bf16.mxu0 0
    %541 = vmatpush1.bf16.msra.mxu0 0
    %542 = vmatprep.subr.bf16.mxu0 0
    %543 = vmatpush1.bf16.msra.mxu0 0
    %544 = vmatprep.subr.bf16.mxu0 0
    %545 = vmatpush1.bf16.msra.mxu0 0
    %546 = vmatprep.subr.bf16.mxu0 0
    %547 = vmatpush1.bf16.msra.mxu0 0
    %548 = vmatprep.subr.bf16.mxu0 0
    %549 = vmatpush1.bf16.msra.mxu0 0
    %550 = vmatprep.subr.bf16.mxu0 0
    %551 = vmatpush1.bf16.msra.mxu0 0
    %552 = vmatprep.subr.bf16.mxu0 0
    %553 = vmatpush1.bf16.msra.mxu0 0
    %554 = vmatprep.mubr.bf16.mxu0 0
    %555 = vmatmul.mubr.bf16.gmra.mrb[0].mxu0 %v161
    %v556 = vpop.f32.mrb[0].mxu0
    %v557 = vadd.f32 0.0, %v556
    %v558 = vpop.f32.mrb[0].mxu0
    %v559 = vpop.f32.mrb[0].mxu0
    %v560 = vadd.f32 0.0, %v559
    %v561 = vpop.f32.mrb[0].mxu0
    %562 = vmatprep.mubr.bf16.mxu0 0
    %563 = vmatmul.mubr.bf16.gmra.mrb[0].mxu0 %v162
    %v564 = vpop.f32.mrb[0].mxu0
    %v565 = vadd.f32 0.0, %v564
    %v566 = vpop.f32.mrb[0].mxu0
    %v567 = vpop.f32.mrb[0].mxu0
    %v568 = vadd.f32 0.0, %v567
    %v569 = vpop.f32.mrb[0].mxu0
    %570 = vmatprep.mubr.bf16.mxu0 0
    %571 = vmatmul.mubr.bf16.gmra.mrb[0].mxu0 %v163
    %v572 = vpop.f32.mrb[0].mxu0
    %v573 = vadd.f32 0.0, %v572
    %v574 = vpop.f32.mrb[0].mxu0
    %v575 = vpop.f32.mrb[0].mxu0
    %v576 = vadd.f32 0.0, %v575
    %v577 = vpop.f32.mrb[0].mxu0
    %578 = vmatprep.mubr.bf16.mxu0 0
    %579 = vmatmul.mubr.bf16.gmra.mrb[0].mxu0 %v164
    %v580 = vpop.f32.mrb[0].mxu0
    %v581 = vadd.f32 0.0, %v580
    %v582 = vpop.f32.mrb[0].mxu0
    %v583 = vpop.f32.mrb[0].mxu0
    %v584 = vadd.f32 0.0, %v583
    %v585 = vpop.f32.mrb[0].mxu0
    %586 = vmatprep.mubr.bf16.mxu0 0
    %587 = vmatmul.mubr.bf16.gmra.mrb[0].mxu0 %v165
    %v588 = vpop.f32.mrb[0].mxu0
    %v589 = vadd.f32 0.0, %v588
    %v590 = vpop.f32.mrb[0].mxu0
    %v591 = vpop.f32.mrb[0].mxu0
    %v592 = vadd.f32 0.0, %v591
    %v593 = vpop.f32.mrb[0].mxu0
    %594 = vmatprep.mubr.bf16.mxu0 0
    %595 = vmatmul.mubr.bf16.gmra.mrb[0].mxu0 %v166
    %v596 = vpop.f32.mrb[0].mxu0
    %v597 = vadd.f32 0.0, %v596
    %v598 = vpop.f32.mrb[0].mxu0
    %v599 = vpop.f32.mrb[0].mxu0
    %v600 = vadd.f32 0.0, %v599
    %v601 = vpop.f32.mrb[0].mxu0
    %602 = vmatprep.mubr.bf16.mxu0 0
    %603 = vmatmul.mubr.bf16.gmra.mrb[0].mxu0 %v167
    %v604 = vpop.f32.mrb[0].mxu0
    %v605 = vadd.f32 0.0, %v604
    %v606 = vpop.f32.mrb[0].mxu0
    %v607 = vpop.f32.mrb[0].mxu0
    %v608 = vadd.f32 0.0, %v607
    %v609 = vpop.f32.mrb[0].mxu0
    %610 = vmatprep.mubr.bf16.mxu0 0
    %611 = vmatmul.mubr.bf16.gmra.mrb[0].mxu0 %v168
    %v612 = vpop.f32.mrb[0].mxu0
    %v613 = vadd.f32 0.0, %v612
    %v614 = vpop.f32.mrb[0].mxu0
    %v615 = vpop.f32.mrb[0].mxu0
    %v616 = vadd.f32 0.0, %v615
    %v617 = vpop.f32.mrb[0].mxu0
    %618 = vdwg.mxu0
    %v619 = vpack.c.bf16 %v560, %v557
    %v620 = vpack.c.bf16 %v568, %v565
    %v621 = vpack.c.bf16 %v576, %v573
    %v622 = vpack.c.bf16 %v584, %v581
    %v623 = vpack.c.bf16 %v592, %v589
    %v624 = vpack.c.bf16 %v600, %v597
    %v625 = vpack.c.bf16 %v608, %v605
    %v626 = vpack.c.bf16 %v616, %v613
    %v628 = vlaneseq
    %v629 = vshrl.u32 %v628, 7
    %v630 = vsub.s32 0, %v629
    %v631 = vrot.slane %v521, %v630
    %v649 = vunpack.c.l.b16 %v505
    %v650 = vunpack.c.l.b16 %v506
    %v651 = vunpack.c.l.b16 %v507
    %v652 = vunpack.c.l.b16 %v508
    %v653 = vunpack.c.l.b16 %v509
    %v654 = vunpack.c.l.b16 %v510
    %v655 = vunpack.c.l.b16 %v511
    %v656 = vunpack.c.l.b16 %v512
    %v657 = vunpack.c.l.b16 %v513
    %v658 = vunpack.c.l.b16 %v514
    %v659 = vunpack.c.l.b16 %v515
    %v660 = vunpack.c.l.b16 %v516
    %v661 = vunpack.c.l.b16 %v517
    %v662 = vunpack.c.l.b16 %v518
    %v663 = vunpack.c.l.b16 %v519
    %v664 = vunpack.c.l.b16 %v520
    %v665 = vpack.c.b16 %v650, %v649
    %v666 = vpack.c.b16 %v652, %v651
    %v667 = vpack.c.b16 %v654, %v653
    %v668 = vpack.c.b16 %v656, %v655
    %v669 = vpack.c.b16 %v658, %v657
    %v670 = vpack.c.b16 %v660, %v659
    %v671 = vpack.c.b16 %v662, %v661
    %v672 = vpack.c.b16 %v664, %v663
    %681 = vmatprep.subr.bf16.mxu0 0
    %682 = vmatpush1.bf16.msra.mxu0 %v665
    %683 = vmatprep.subr.bf16.mxu0 0
    %684 = vmatpush1.bf16.msra.mxu0 %v666
    %685 = vmatprep.subr.bf16.mxu0 0
    %686 = vmatpush1.bf16.msra.mxu0 %v667
    %687 = vmatprep.subr.bf16.mxu0 0
    %688 = vmatpush1.bf16.msra.mxu0 %v668
    %689 = vmatprep.subr.bf16.mxu0 0
    %690 = vmatpush1.bf16.msra.mxu0 %v669
    %691 = vmatprep.subr.bf16.mxu0 0
    %692 = vmatpush1.bf16.msra.mxu0 %v670
    %693 = vmatprep.subr.bf16.mxu0 0
    %694 = vmatpush1.bf16.msra.mxu0 %v671
    %695 = vmatprep.subr.bf16.mxu0 0
    %696 = vmatpush1.bf16.msra.mxu0 %v672
    %697 = vmatprep.subr.bf16.mxu0 0
    %698 = vmatpush1.bf16.msra.mxu0 0
    %699 = vmatprep.subr.bf16.mxu0 0
    %700 = vmatpush1.bf16.msra.mxu0 0
    %701 = vmatprep.subr.bf16.mxu0 0
    %702 = vmatpush1.bf16.msra.mxu0 0
    %703 = vmatprep.subr.bf16.mxu0 0
    %704 = vmatpush1.bf16.msra.mxu0 0
    %705 = vmatprep.subr.bf16.mxu0 0
    %706 = vmatpush1.bf16.msra.mxu0 0
    %707 = vmatprep.subr.bf16.mxu0 0
    %708 = vmatpush1.bf16.msra.mxu0 0
    %709 = vmatprep.subr.bf16.mxu0 0
    %710 = vmatpush1.bf16.msra.mxu0 0
    %711 = vmatprep.subr.bf16.mxu0 0
    %712 = vmatpush1.bf16.msra.mxu0 0
    %713 = vmatprep.mubr.bf16.mxu0 0
    %714 = vmatmul.mubr.bf16.gmra.mrb[0].mxu0 %v619
    %v715 = vpop.f32.mrb[0].mxu0
    %v716 = vadd.f32 %v631, %v715
    %v717 = vpop.f32.mrb[0].mxu0
    %v718 = vpop.f32.mrb[0].mxu0
    %v719 = vadd.f32 %v631, %v718
    %v720 = vpop.f32.mrb[0].mxu0
    %721 = vmatprep.mubr.bf16.mxu0 0
    %722 = vmatmul.mubr.bf16.gmra.mrb[0].mxu0 %v620
    %v723 = vpop.f32.mrb[0].mxu0
    %v724 = vadd.f32 %v631, %v723
    %v725 = vpop.f32.mrb[0].mxu0
    %v726 = vpop.f32.mrb[0].mxu0
    %v727 = vadd.f32 %v631, %v726
    %v728 = vpop.f32.mrb[0].mxu0
    %729 = vmatprep.mubr.bf16.mxu0 0
    %730 = vmatmul.mubr.bf16.gmra.mrb[0].mxu0 %v621
    %v731 = vpop.f32.mrb[0].mxu0
    %v732 = vadd.f32 %v631, %v731
    %v733 = vpop.f32.mrb[0].mxu0
    %v734 = vpop.f32.mrb[0].mxu0
    %v735 = vadd.f32 %v631, %v734
    %v736 = vpop.f32.mrb[0].mxu0
    %737 = vmatprep.mubr.bf16.mxu0 0
    %738 = vmatmul.mubr.bf16.gmra.mrb[0].mxu0 %v622
    %v739 = vpop.f32.mrb[0].mxu0
    %v740 = vadd.f32 %v631, %v739
    %v741 = vpop.f32.mrb[0].mxu0
    %v742 = vpop.f32.mrb[0].mxu0
    %v743 = vadd.f32 %v631, %v742
    %v744 = vpop.f32.mrb[0].mxu0
    %745 = vmatprep.mubr.bf16.mxu0 0
    %746 = vmatmul.mubr.bf16.gmra.mrb[0].mxu0 %v623
    %v747 = vpop.f32.mrb[0].mxu0
    %v748 = vadd.f32 %v631, %v747
    %v749 = vpop.f32.mrb[0].mxu0
    %v750 = vpop.f32.mrb[0].mxu0
    %v751 = vadd.f32 %v631, %v750
    %v752 = vpop.f32.mrb[0].mxu0
    %753 = vmatprep.mubr.bf16.mxu0 0
    %754 = vmatmul.mubr.bf16.gmra.mrb[0].mxu0 %v624
    %v755 = vpop.f32.mrb[0].mxu0
    %v756 = vadd.f32 %v631, %v755
    %v757 = vpop.f32.mrb[0].mxu0
    %v758 = vpop.f32.mrb[0].mxu0
    %v759 = vadd.f32 %v631, %v758
    %v760 = vpop.f32.mrb[0].mxu0
    %761 = vmatprep.mubr.bf16.mxu0 0
    %762 = vmatmul.mubr.bf16.gmra.mrb[0].mxu0 %v625
    %v763 = vpop.f32.mrb[0].mxu0
    %v764 = vadd.f32 %v631, %v763
    %v765 = vpop.f32.mrb[0].mxu0
    %v766 = vpop.f32.mrb[0].mxu0
    %v767 = vadd.f32 %v631, %v766
    %v768 = vpop.f32.mrb[0].mxu0
    %769 = vmatprep.mubr.bf16.mxu0 0
    %770 = vmatmul.mubr.bf16.gmra.mrb[0].mxu0 %v626
    %v771 = vpop.f32.mrb[0].mxu0
    %v772 = vadd.f32 %v631, %v771
    %v773 = vpop.f32.mrb[0].mxu0
    %v774 = vpop.f32.mrb[0].mxu0
    %v775 = vadd.f32 %v631, %v774
    %v776 = vpop.f32.mrb[0].mxu0
    %777 = vdwg.mxu0
    %778 = vst [vmem:[#allocation10] sm:$0xff] %v716
    %779 = vst [vmem:[#allocation10 + $0x8] sm:$0xff] %v719
    %780 = vst [vmem:[#allocation10 + $0x10] sm:$0xff] %v724
    %781 = vst [vmem:[#allocation10 + $0x18] sm:$0xff] %v727
    %782 = vst [vmem:[#allocation10 + $0x20] sm:$0xff] %v732
    %783 = vst [vmem:[#allocation10 + $0x28] sm:$0xff] %v735
    %784 = vst [vmem:[#allocation10 + $0x30] sm:$0xff] %v740
    %785 = vst [vmem:[#allocation10 + $0x38] sm:$0xff] %v743
    %786 = vst [vmem:[#allocation10 + $0x40] sm:$0xff] %v748
    %787 = vst [vmem:[#allocation10 + $0x48] sm:$0xff] %v751
    %788 = vst [vmem:[#allocation10 + $0x50] sm:$0xff] %v756
    %789 = vst [vmem:[#allocation10 + $0x58] sm:$0xff] %v759
    %790 = vst [vmem:[#allocation10 + $0x60] sm:$0xff] %v764
    %791 = vst [vmem:[#allocation10 + $0x68] sm:$0xff] %v767
    %792 = vst [vmem:[#allocation10 + $0x70] sm:$0xff] %v772
    %793 = vst [vmem:[#allocation10 + $0x78] sm:$0xff] %v775
    // Predicated region
    $region42: #{tpu_custom_call.1} parent=1 // pred_check
      _
    $region43: #{tpu_custom_call.1} parent=1 // pred_check_branch
      %795 = sbr.rel (0) target = $region45
    $region44: #{tpu_custom_call.1} parent=1 // pred_region
      %s797 = ssub.s32 2048, 2048
      %798 = vsyncadd [#allocation4], %s797
      %s799 = sshll.u32 [#allocation10], 4
      %s800 = int_to_ptr.vmem [resolvable:$true] %s799
      %805 = dma.vmem_to_hbm [thread:$0]  %s800, 2048, %s6, [#allocation4], 128, 128, 8
    $region45: #{tpu_custom_call.1} parent=1 // pred_fallthru
      _
    // Predicated region
    $region46: #{tpu_custom_call.1} parent=1 // pred_check
      _
    $region47: #{tpu_custom_call.1} parent=1 // pred_check_branch
      %807 = sbr.rel (0) target = $region49
    $region48: #{tpu_custom_call.1} parent=1 // pred_region
      %808 = dma.done [#allocation4], 2048
    $region49: #{tpu_custom_call.1} parent=1 // pred_fallthru
      _
    %809 = vsyncpa [#allocation3], 1
    %810 = vsyncpa [#allocation6], 1
    %811 = vsyncpa [#allocation9], 1
    %812 = vsyncpa [#allocation4], 1

</llo_original>
